<compile_context>
chip_gen: v7x
topology: tpu7x:2x2x1
jax: 0.10.0
libtpu: 0.0.40
codegen_flags: <defaults>
</compile_context>

<pallas_src>
import functools

import jax
import jax.numpy as jnp
from jax.experimental import pallas as pl
from jax.experimental.pallas import tpu as pltpu


def _round_up(a, b):
    return (a + b - 1) // b * b


def _cdiv(a, b):
    return -(-a // b)


def _vmem_capacity_bytes():
    """Per-core VMEM capacity; conservative (v7x) fallback if query fails."""
    try:
        return int(pltpu.get_tpu_info().vmem_capacity_bytes)
    except Exception:
        return 64 * 1024 * 1024


def _dwconv3x3(xf, taps, masks, H, W):
    """Depthwise 3x3 cross-correlation (stride 1, zero pad 1) on flattened rows.

    xf:    (Rb, H*W) f32  -- each row is one (n, c) image plane, flattened.
    taps:  (Rb, >=9) f32  -- columns 0..8 hold that row's 3x3 taps (row-major).
    masks: (4,  H*W) f32  -- {not_left, not_right, not_top, not_bot} 0/1 masks.
    Returns (Rb, H*W) f32 (conv WITHOUT bias).
    """
    HW = H * W
    not_left = masks[0:1, :]
    not_right = masks[1:2, :]
    not_top = masks[2:3, :]
    not_bot = masks[3:4, :]

    # Hoisted, masked horizontal neighbours (2 rolls + 2 muls total).
    x_left = pltpu.roll(xf, 1, 1) * not_left            # value of x[h, w-1]
    x_right = pltpu.roll(xf, (HW - 1) % HW, 1) * not_right   # value of x[h, w+1]

    def hcombo(kl, kc, kr):
        # Per-kernel-row horizontal combination; tap weights are per-row scalars.
        return (x_left * taps[:, kl:kl + 1]
                + xf * taps[:, kc:kc + 1]
                + x_right * taps[:, kr:kr + 1])

    top = hcombo(0, 1, 2)     # kernel row dh = -1
    mid = hcombo(3, 4, 5)     # kernel row dh =  0
    bot = hcombo(6, 7, 8)     # kernel row dh = +1

    acc = mid
    acc = acc + pltpu.roll(top, W % HW, 1) * not_top           # shift down one image row
    acc = acc + pltpu.roll(bot, (HW - W) % HW, 1) * not_bot    # shift up one image row
    return acc


def _frelu_stats_kernel(x_ref, taps_ref, masks_ref, sums_ref, *, H, W):
    """Per-row sum and sum-of-squares of c = depthwise_conv(x) (no bias)."""
    xf = x_ref[...].astype(jnp.float32)                  # bf16 -> f32
    c = _dwconv3x3(xf, taps_ref[...], masks_ref[...], H, W)
    s = jnp.sum(c, axis=1, keepdims=True)
    sq = jnp.sum(c * c, axis=1, keepdims=True)
    sums_ref[...] = jnp.concatenate([s, sq], axis=1)


def _frelu_apply_kernel(x_ref, aux_ref, masks_ref, o_ref, *, H, W):
    """out = max(x, conv_scaled(x) + shift'); BN + conv bias folded into aux."""
    xf = x_ref[...].astype(jnp.float32)                  # bf16 -> f32
    aux = aux_ref[...]                                   # (Rb, 10): 9 scaled taps + shift'
    y = _dwconv3x3(xf, aux, masks_ref[...], H, W) + aux[:, 9:10]
    o_ref[...] = jnp.maximum(xf, y).astype(o_ref.dtype)


def frelu_forward(x_nchw, params, *, eps=1e-5, rows_per_step=512,
                  io_dtype=jnp.bfloat16):
    """Pallas FReLU forward. x_nchw: (N, C, H, W). Returns same shape/dtype."""
    N, C, H, W = x_nchw.shape
    HW = H * W
    R = N * C

    # NCHW -> (N*C, H*W) is a pure view of contiguous memory: no transpose, and
    # the large flattened-spatial axis lands on the lane dimension.
    x_rows = x_nchw.reshape(R, HW).astype(io_dtype)

    # --- VMEM-aware row-block sizing (also minimizes zero-row padding) -----
    io_bytes = jnp.dtype(io_dtype).itemsize
    vmem_cap = _vmem_capacity_bytes()                    # 128 MiB v5e/v6e, 64 MiB v7x
    vmem_limit = int(min(vmem_cap * 3 // 4, 100 * 1024 * 1024))
    # Live bytes per element: 2 in + 2 out pipeline buffers (io dtype) plus ~7
    # block-sized f32 conv temporaries; use half the limit as the block budget.
    bytes_per_elem = 4 * io_bytes + 7 * 4
    rb_max = max(8, (vmem_limit // 2) // (HW * bytes_per_elem) // 8 * 8)
    rb_cap = max(8, min(rb_max, _round_up(rows_per_step, 8)))
    n_steps = _cdiv(R, rb_cap)
    Rb = _round_up(_cdiv(R, n_steps), 8)                 # minimal padding for this R
    R_pad = _round_up(R, Rb)
    grid = (R_pad // Rb,)

    def pad_rows(a):
        return jnp.pad(a, ((0, R_pad - R), (0, 0))) if R_pad != R else a

    x_rows = pad_rows(x_rows)

    # Host-precomputed edge masks (no in-kernel iota / modulo).
    idx = jnp.arange(HW, dtype=jnp.int32)
    w_idx = idx % W
    h_idx = idx // W
    masks = jnp.stack([
        (w_idx >= 1), (w_idx <= W - 2), (h_idx >= 1), (h_idx <= H - 2)
    ]).astype(jnp.float32)                               # (4, HW)

    # Per-row (= per (n, c)) raw taps for the stats pass.
    w_taps = params['w'].reshape(C, 9).astype(jnp.float32)
    taps_rows = pad_rows(jnp.tile(w_taps, (N, 1)))       # (R_pad, 9)

    row_spec = pl.BlockSpec((Rb, HW), lambda r: (r, 0))
    mask_spec = pl.BlockSpec((4, HW), lambda r: (0, 0))
    cparams = pltpu.CompilerParams(
        dimension_semantics=("parallel",),
        vmem_limit_bytes=vmem_limit,
    )

    # Pass 1: conv statistics (per-row sum / sumsq of the unbiased conv),
    # fused with the conv itself.
    sums = pl.pallas_call(
        functools.partial(_frelu_stats_kernel, H=H, W=W),
        out_shape=jax.ShapeDtypeStruct((R_pad, 2), jnp.float32),
        grid_spec=pltpu.PrefetchScalarGridSpec(
            num_scalar_prefetch=0,
            grid=grid,
            in_specs=[row_spec,
                      pl.BlockSpec((Rb, 9), lambda r: (r, 0)),
                      mask_spec],
            out_specs=pl.BlockSpec((Rb, 2), lambda r: (r, 0)),
        ),
        compiler_params=cparams,
    )(x_rows, taps_rows, masks)

    # Tiny per-channel reduction + BN fold in plain JAX (training-mode stats).
    # Conv bias only shifts the mean; variance of x1 equals variance of the
    # unbiased conv output.
    cnt = N * H * W
    sum_c = sums[:R, 0].reshape(N, C).sum(axis=0)
    sq_c = sums[:R, 1].reshape(N, C).sum(axis=0)
    mean_c = sum_c / cnt
    var_c = sq_c / cnt - mean_c * mean_c                 # biased variance (one-pass)
    inv = jax.lax.rsqrt(var_c + eps)
    scale = params['gamma'].astype(jnp.float32) * inv
    # y = scale*(conv(x)+b) + (beta - (mean_c+b)*scale)
    #   = (scale*taps) (*) x + (beta - mean_c*scale)
    shift = params['beta'].astype(jnp.float32) - mean_c * scale
    taps_scaled = w_taps * scale[:, None]                # (C, 9)
    aux_apply = pad_rows(jnp.concatenate(
        [jnp.tile(taps_scaled, (N, 1)),
         jnp.tile(shift, N)[:, None]], axis=1))          # (R_pad, 10)

    # Pass 2: recompute the conv with BN-folded taps, add shift', elementwise max.
    out_rows = pl.pallas_call(
        functools.partial(_frelu_apply_kernel, H=H, W=W),
        out_shape=jax.ShapeDtypeStruct((R_pad, HW), io_dtype),
        grid_spec=pltpu.PrefetchScalarGridSpec(
            num_scalar_prefetch=0,
            grid=grid,
            in_specs=[row_spec,
                      pl.BlockSpec((Rb, 10), lambda r: (r, 0)),
                      mask_spec],
            out_specs=row_spec,
        ),
        compiler_params=cparams,
    )(x_rows, aux_apply, masks)

    return out_rows[:R].reshape(N, C, H, W).astype(x_nchw.dtype)


def frelu_reference(x, params, eps=1e-5):
    """Pure-JAX reference (lax.conv with feature_group_count) for validation."""
    N, C, H, W = x.shape
    x = x.astype(jnp.float32)
    w = params['w'][:, None, :, :]                       # (C, 1, 3, 3) OIHW, groups=C
    x1 = jax.lax.conv_general_dilated(
        x, w, (1, 1), [(1, 1), (1, 1)],
        dimension_numbers=('NCHW', 'OIHW', 'NCHW'),
        feature_group_count=C)
    x1 = x1 + params['b'][None, :, None, None]
    mean = jnp.mean(x1, axis=(0, 2, 3))
    var = jnp.mean((x1 - mean[None, :, None, None]) ** 2, axis=(0, 2, 3))
    y = (x1 - mean[None, :, None, None]) * jax.lax.rsqrt(var + eps)[None, :, None, None]
    y = y * params['gamma'][None, :, None, None] + params['beta'][None, :, None, None]
    return jnp.maximum(x, y)


def make_params(key, C):
    ks = jax.random.split(key, 4)
    return {
        'w': 0.3 * jax.random.normal(ks[0], (C, 3, 3), jnp.float32),   # depthwise taps
        'b': 0.1 * jax.random.normal(ks[1], (C,), jnp.float32),        # conv bias
        'gamma': 1.0 + 0.1 * jax.random.normal(ks[2], (C,), jnp.float32),
        'beta': 0.1 * jax.random.normal(ks[3], (C,), jnp.float32),
    }


if __name__ == "__main__":
    N, C, H, W = 2, 4, 16, 16
    key = jax.random.PRNGKey(0)
    kx, kp = jax.random.split(key)
    x = jax.random.normal(kx, (N, C, H, W), jnp.float32)     # NCHW, like PyTorch
    params = make_params(kp, C)

    out = frelu_forward(x, params)
    out = jax.block_until_ready(out)

    ref = frelu_reference(x, params)
    assert out.shape == (N, C, H, W)
    max_err = float(jnp.max(jnp.abs(out - ref)))
    # Tolerance loosened for bf16 HBM I/O (f32 math inside the kernels).
    assert jnp.allclose(out, ref, rtol=5e-2, atol=5e-2), max_err

    print("KERNEL_OK")
</pallas_src>

<mosaic_0001>
module attributes {stable_mosaic.version = 11 : i64} {
  func.func @_frelu_stats_kernel(%arg0: i32, %arg1: memref<8x256xbf16, #tpu.memory_space<vmem>>, %arg2: memref<8x9xf32, #tpu.memory_space<vmem>>, %arg3: memref<4x256xf32, #tpu.memory_space<vmem>>, %arg4: memref<8x2xf32, #tpu.memory_space<vmem>>) attributes {dimension_semantics = [#tpu.dimension_semantics<parallel>], iteration_bounds = array<i64: 1>, scalar_prefetch = 0 : i64, scratch_operands = 0 : i64, tpu.core_type = #tpu.core_type<tc>, window_params = [{transform_indices = @transform_0, window_bounds = array<i64: 8, 256>}, {transform_indices = @transform_1, window_bounds = array<i64: 8, 9>}, {pipeline_mode = #tpu.pipeline_mode<synchronous>, transform_indices = @transform_2, window_bounds = array<i64: 4, 256>}, {transform_indices = @transform_3, window_bounds = array<i64: 8, 2>}]} {
    %c0 = arith.constant 0 : index
    %c0_0 = arith.constant 0 : index
    %0 = vector.load %arg1[%c0, %c0_0] : memref<8x256xbf16, #tpu.memory_space<vmem>>, vector<8x256xbf16>
    %1 = arith.extf %0 : vector<8x256xbf16> to vector<8x256xf32>
    %c0_1 = arith.constant 0 : index
    %c0_2 = arith.constant 0 : index
    %2 = vector.load %arg2[%c0_1, %c0_2] : memref<8x9xf32, #tpu.memory_space<vmem>>, vector<8x9xf32>
    %c0_3 = arith.constant 0 : index
    %c0_4 = arith.constant 0 : index
    %3 = vector.load %arg3[%c0_3, %c0_4] : memref<4x256xf32, #tpu.memory_space<vmem>>, vector<4x256xf32>
    %4 = vector.extract_strided_slice %3 {offsets = [0, 0], sizes = [1, 256], strides = [1, 1]} : vector<4x256xf32> to vector<1x256xf32>
    %5 = vector.extract_strided_slice %3 {offsets = [1, 0], sizes = [1, 256], strides = [1, 1]} : vector<4x256xf32> to vector<1x256xf32>
    %6 = vector.extract_strided_slice %3 {offsets = [2, 0], sizes = [1, 256], strides = [1, 1]} : vector<4x256xf32> to vector<1x256xf32>
    %7 = vector.extract_strided_slice %3 {offsets = [3, 0], sizes = [1, 256], strides = [1, 1]} : vector<4x256xf32> to vector<1x256xf32>
    %c1_i32 = arith.constant 1 : i32
    %8 = tpu.dynamic_rotate %1 by %c1_i32 dim 1 : vector<8x256xf32>, i32 -> vector<8x256xf32>
    %9 = vector.broadcast %4 : vector<1x256xf32> to vector<8x256xf32>
    %10 = arith.mulf %8, %9 : vector<8x256xf32>
    %c255_i32 = arith.constant 255 : i32
    %11 = tpu.dynamic_rotate %1 by %c255_i32 dim 1 : vector<8x256xf32>, i32 -> vector<8x256xf32>
    %12 = vector.broadcast %5 : vector<1x256xf32> to vector<8x256xf32>
    %13 = arith.mulf %11, %12 : vector<8x256xf32>
    %14 = vector.extract_strided_slice %2 {offsets = [0, 0], sizes = [8, 1], strides = [1, 1]} : vector<8x9xf32> to vector<8x1xf32>
    %15 = vector.broadcast %14 : vector<8x1xf32> to vector<8x256xf32>
    %16 = arith.mulf %10, %15 : vector<8x256xf32>
    %17 = vector.extract_strided_slice %2 {offsets = [0, 1], sizes = [8, 1], strides = [1, 1]} : vector<8x9xf32> to vector<8x1xf32>
    %18 = vector.broadcast %17 : vector<8x1xf32> to vector<8x256xf32>
    %19 = arith.mulf %1, %18 : vector<8x256xf32>
    %20 = arith.addf %16, %19 : vector<8x256xf32>
    %21 = vector.extract_strided_slice %2 {offsets = [0, 2], sizes = [8, 1], strides = [1, 1]} : vector<8x9xf32> to vector<8x1xf32>
    %22 = vector.broadcast %21 : vector<8x1xf32> to vector<8x256xf32>
    %23 = arith.mulf %13, %22 : vector<8x256xf32>
    %24 = arith.addf %20, %23 : vector<8x256xf32>
    %25 = vector.extract_strided_slice %2 {offsets = [0, 3], sizes = [8, 1], strides = [1, 1]} : vector<8x9xf32> to vector<8x1xf32>
    %26 = vector.broadcast %25 : vector<8x1xf32> to vector<8x256xf32>
    %27 = arith.mulf %10, %26 : vector<8x256xf32>
    %28 = vector.extract_strided_slice %2 {offsets = [0, 4], sizes = [8, 1], strides = [1, 1]} : vector<8x9xf32> to vector<8x1xf32>
    %29 = vector.broadcast %28 : vector<8x1xf32> to vector<8x256xf32>
    %30 = arith.mulf %1, %29 : vector<8x256xf32>
    %31 = arith.addf %27, %30 : vector<8x256xf32>
    %32 = vector.extract_strided_slice %2 {offsets = [0, 5], sizes = [8, 1], strides = [1, 1]} : vector<8x9xf32> to vector<8x1xf32>
    %33 = vector.broadcast %32 : vector<8x1xf32> to vector<8x256xf32>
    %34 = arith.mulf %13, %33 : vector<8x256xf32>
    %35 = arith.addf %31, %34 : vector<8x256xf32>
    %36 = vector.extract_strided_slice %2 {offsets = [0, 6], sizes = [8, 1], strides = [1, 1]} : vector<8x9xf32> to vector<8x1xf32>
    %37 = vector.broadcast %36 : vector<8x1xf32> to vector<8x256xf32>
    %38 = arith.mulf %10, %37 : vector<8x256xf32>
    %39 = vector.extract_strided_slice %2 {offsets = [0, 7], sizes = [8, 1], strides = [1, 1]} : vector<8x9xf32> to vector<8x1xf32>
    %40 = vector.broadcast %39 : vector<8x1xf32> to vector<8x256xf32>
    %41 = arith.mulf %1, %40 : vector<8x256xf32>
    %42 = arith.addf %38, %41 : vector<8x256xf32>
    %43 = vector.extract_strided_slice %2 {offsets = [0, 8], sizes = [8, 1], strides = [1, 1]} : vector<8x9xf32> to vector<8x1xf32>
    %44 = vector.broadcast %43 : vector<8x1xf32> to vector<8x256xf32>
    %45 = arith.mulf %13, %44 : vector<8x256xf32>
    %46 = arith.addf %42, %45 : vector<8x256xf32>
    %c16_i32 = arith.constant 16 : i32
    %47 = tpu.dynamic_rotate %24 by %c16_i32 dim 1 : vector<8x256xf32>, i32 -> vector<8x256xf32>
    %48 = vector.broadcast %6 : vector<1x256xf32> to vector<8x256xf32>
    %49 = arith.mulf %47, %48 : vector<8x256xf32>
    %50 = arith.addf %35, %49 : vector<8x256xf32>
    %c240_i32 = arith.constant 240 : i32
    %51 = tpu.dynamic_rotate %46 by %c240_i32 dim 1 : vector<8x256xf32>, i32 -> vector<8x256xf32>
    %52 = vector.broadcast %7 : vector<1x256xf32> to vector<8x256xf32>
    %53 = arith.mulf %51, %52 : vector<8x256xf32>
    %54 = arith.addf %50, %53 : vector<8x256xf32>
    %cst = arith.constant dense<0.000000e+00> : vector<8xf32>
    %55 = vector.multi_reduction <add>, %54, %cst [1] : vector<8x256xf32> to vector<8xf32>
    %56 = vector.shape_cast %55 : vector<8xf32> to vector<8x1xf32>
    %57 = arith.mulf %54, %54 : vector<8x256xf32>
    %cst_5 = arith.constant dense<0.000000e+00> : vector<8xf32>
    %58 = vector.multi_reduction <add>, %57, %cst_5 [1] : vector<8x256xf32> to vector<8xf32>
    %59 = vector.shape_cast %58 : vector<8xf32> to vector<8x1xf32>
    %60 = tpu.concatenate %56, %59 in 1 : vector<8x1xf32>, vector<8x1xf32> -> vector<8x2xf32>
    %c0_6 = arith.constant 0 : index
    %c0_7 = arith.constant 0 : index
    %61 = vector.load %arg4[%c0_6, %c0_7] : memref<8x2xf32, #tpu.memory_space<vmem>>, vector<8x2xf32>
    tpu.vector_store %arg4[%c0_6, %c0_7], %60 {strides = array<i32>} : memref<8x2xf32, #tpu.memory_space<vmem>>, vector<8x2xf32>,
    return
  }
  func.func @transform_0(%arg0: i32) -> (i32, i32) {
    %c0_i32 = arith.constant 0 : i32
    %c0_i32_0 = arith.constant 0 : i32
    return %arg0, %c0_i32 : i32, i32
  }
  func.func @transform_1(%arg0: i32) -> (i32, i32) {
    %c0_i32 = arith.constant 0 : i32
    %c0_i32_0 = arith.constant 0 : i32
    return %arg0, %c0_i32 : i32, i32
  }
  func.func @transform_2(%arg0: i32) -> (i32, i32) {
    %c0_i32 = arith.constant 0 : i32
    %c0_i32_0 = arith.constant 0 : i32
    %c0_i32_1 = arith.constant 0 : i32
    return %c0_i32, %c0_i32_0 : i32, i32
  }
  func.func @transform_3(%arg0: i32) -> (i32, i32) {
    %c0_i32 = arith.constant 0 : i32
    %c0_i32_0 = arith.constant 0 : i32
    return %arg0, %c0_i32 : i32, i32
  }
}

</mosaic_0001>

<llo_original>
// kernel: tpu_custom_call.1
$region0: #{tpu_custom_call.1}
  #allocation0 [shape = 'u32[]', space=smem, size = 0x4, offset = 0x4, fixed_abs, tag = 'smem constant byte address 0x4 - core index']
  #allocation1 [shape = 'u32[144,128]{1,0:T(1,128)}', space=vmem, size = 0x12000, scoped, tag = 'internal scratch']
  %s0 = inlined_call_operand.hbm [shape: bf16[8,256], index: 0, kind: input, shape index: {}]
  %s1 = inlined_call_operand.hbm [shape: f32[8,9], index: 1, kind: input, shape index: {}]
  %s2 = inlined_call_operand.hbm [shape: f32[4,256], index: 2, kind: input, shape index: {}]
  %s3 = inlined_call_operand.vmem [shape: f32[8,2], index: 3, kind: output, shape index: {}]
  %s4 = sld [smem:[#allocation0]]
  $region34: #{tpu_custom_call.1} parent=0
    _
  %s6 = ssub.s32 1, %s4
  %s7 = scalar_select 0, %s6, %s4
  $region1: #{tpu_custom_call.1} parent=0
    #allocation2 [shape = 'u8[4096]{0}', space=vmem, size = 0x1000, scoped, tag = 'input window, operand 0, single buffered']
    #allocation3 [shape = 's32[1]{0}', space=sflag, size = 0x4, scoped, tag = 'scoped memory for tpu_custom_call.1']
    #allocation4 [shape = 'u8[4096]{0}', space=vmem, size = 0x1000, scoped, tag = 'input window, operand 1, single buffered']
    #allocation5 [shape = 's32[1]{0}', space=sflag, size = 0x4, scoped, tag = 'scoped memory for tpu_custom_call.1']
    #allocation6 [shape = 'u8[4096]{0}', space=vmem, size = 0x1000, scoped, tag = 'input window, operand 2, single buffered']
    %8 = vsyncpa [#allocation3], 0
    %9 = vsyncpa [#allocation5], 0
    // Predicated region
    $region2: #{tpu_custom_call.1} parent=1 // pred_check
      _
    $region3: #{tpu_custom_call.1} parent=1 // pred_check_branch
      %11 = sbr.rel (0) target = $region5
    $region4: #{tpu_custom_call.1} parent=1 // pred_region
      %s13 = ssub.s32 128, 128
      %14 = vsyncadd [#allocation3], %s13
      %s16 = sshll.u32 [#allocation2], 4
      %s17 = int_to_ptr.vmem [resolvable:$true] %s16
      %19 = dma.hbm_to_vmem [thread:$0]  %s0, 128, %s17, [#allocation3]
    $region5: #{tpu_custom_call.1} parent=1 // pred_fallthru
      _
    // Predicated region
    $region6: #{tpu_custom_call.1} parent=1 // pred_check
      _
    $region7: #{tpu_custom_call.1} parent=1 // pred_check_branch
      %21 = sbr.rel (0) target = $region9
    $region8: #{tpu_custom_call.1} parent=1 // pred_region
      %s23 = ssub.s32 128, 128
      %24 = vsyncadd [#allocation5], %s23
      %s26 = sshll.u32 [#allocation4], 4
      %s27 = int_to_ptr.vmem [resolvable:$true] %s26
      %29 = dma.hbm_to_vmem [thread:$0]  %s1, 128, %s27, [#allocation5]
    $region9: #{tpu_custom_call.1} parent=1 // pred_fallthru
      _
    // Predicated region
    $region10: #{tpu_custom_call.1} parent=1 // pred_check
      _
    $region11: #{tpu_custom_call.1} parent=1 // pred_check_branch
      %31 = sbr.rel (0) target = $region13
    $region12: #{tpu_custom_call.1} parent=1 // pred_region
      %s33 = ssub.s32 128, 128
      %34 = vsyncadd [#allocation5], %s33
      %s36 = sshll.u32 [#allocation6], 4
      %s37 = int_to_ptr.vmem [resolvable:$true] %s36
      %39 = dma.hbm_to_vmem [thread:$0]  %s2, 128, %s37, [#allocation5]
    $region13: #{tpu_custom_call.1} parent=1 // pred_fallthru
      _
    // Predicated region
    $region14: #{tpu_custom_call.1} parent=1 // pred_check
      _
    $region15: #{tpu_custom_call.1} parent=1 // pred_check_branch
      %41 = sbr.rel (0) target = $region17
    $region16: #{tpu_custom_call.1} parent=1 // pred_region
      %42 = dma.done [#allocation3], 128
    $region17: #{tpu_custom_call.1} parent=1 // pred_fallthru
      _
    // Predicated region
    $region18: #{tpu_custom_call.1} parent=1 // pred_check
      _
    $region19: #{tpu_custom_call.1} parent=1 // pred_check_branch
      %44 = sbr.rel (0) target = $region21
    $region20: #{tpu_custom_call.1} parent=1 // pred_region
      %45 = dma.done [#allocation5], 128
    $region21: #{tpu_custom_call.1} parent=1 // pred_fallthru
      _
    // Predicated region
    $region22: #{tpu_custom_call.1} parent=1 // pred_check
      _
    $region23: #{tpu_custom_call.1} parent=1 // pred_check_branch
      %47 = sbr.rel (0) target = $region25
    $region24: #{tpu_custom_call.1} parent=1 // pred_region
      %48 = dma.done [#allocation5], 128
    $region25: #{tpu_custom_call.1} parent=1 // pred_fallthru
      _
    %v49 = vld [vmem:[#allocation2] sm:$0xff]
    %v50 = vunpack.c.l.bf16 %v49
    %v51 = vunpack.c.h.bf16 %v49
    %v52 = vld [vmem:[#allocation4] sm:$0xff]
    %v53 = vld [vmem:[#allocation6] sm:$0xff]
    %54 = vrot.lane.b32.xlu0 %v50, 1
    %v55 = vpop.permute.xlu0 %54
    %56 = vrot.lane.b32.xlu0 %v51, 1
    %v57 = vpop.permute.xlu0 %56
    %v58 = vlaneseq
    %v59 = vand.u32 %v58, 127
    %vm60 = vcmp.lt.s32.totalorder %v59, 1
    %v61 = vsel %vm60, %v55, %v57
    %v62 = vsel %vm60, %v57, %v55
    %v64 = vlaneseq
    %v65 = vshrl.u32 %v64, 7
    %v66 = vsub.s32 0, %v65
    %v67 = vrot.slane %v53, %v66
    %v68 = vlaneseq
    %v69 = vshrl.u32 %v68, 7
    %v70 = vsub.s32 4, %v69
    %v71 = vrot.slane %v53, %v70
    %v74 = vlaneseq
    %v75 = vshrl.u32 %v74, 7
    %v76 = vsub.s32 0, %v75
    %v77 = vrot.slane %v67, %v76
    %v78 = vlaneseq
    %v79 = vshrl.u32 %v78, 7
    %v80 = vsub.s32 0, %v79
    %v81 = vrot.slane %v71, %v80
    %v82 = vmul.f32 %v62, %v77
    %v83 = vmul.f32 %v61, %v81
    %84 = vrot.lane.b32.xlu0 %v50, 127
    %v85 = vpop.permute.xlu0 %84
    %86 = vrot.lane.b32.xlu0 %v51, 127
    %v87 = vpop.permute.xlu0 %86
    %vm88 = vcmp.lt.s32.totalorder %v59, 127
    %v89 = vsel %vm88, %v85, %v87
    %v90 = vsel %vm88, %v87, %v85
    %v91 = vlaneseq
    %v92 = vshrl.u32 %v91, 7
    %v93 = vsub.s32 1, %v92
    %v94 = vrot.slane %v53, %v93
    %v95 = vlaneseq
    %v96 = vshrl.u32 %v95, 7
    %v97 = vsub.s32 5, %v96
    %v98 = vrot.slane %v53, %v97
    %v101 = vlaneseq
    %v102 = vshrl.u32 %v101, 7
    %v103 = vsub.s32 1, %v102
    %v104 = vrot.slane %v94, %v103
    %v105 = vlaneseq
    %v106 = vshrl.u32 %v105, 7
    %v107 = vsub.s32 1, %v106
    %v108 = vrot.slane %v98, %v107
    %v109 = vmul.f32 %v89, %v104
    %v110 = vmul.f32 %v90, %v108
    %112 = vset.pattern.permute.xlu0 0
    %113 = vperm.xlu0 %112, %v52
    %v114 = vpop.permute.xlu0 %113
    %v116 = vmul.f32 %v82, %v114
    %v117 = vmul.f32 %v83, %v114
    %118 = vset.pattern.permute.xlu0 1
    %119 = vperm.xlu0 %118, %v52
    %v120 = vpop.permute.xlu0 %119
    %v122 = vmul.f32 %v50, %v120
    %v123 = vmul.f32 %v51, %v120
    %v124 = vadd.f32 %v116, %v122
    %v125 = vadd.f32 %v117, %v123
    %126 = vset.pattern.permute.xlu0 2
    %127 = vperm.xlu0 %126, %v52
    %v128 = vpop.permute.xlu0 %127
    %v130 = vmul.f32 %v109, %v128
    %v131 = vmul.f32 %v110, %v128
    %v132 = vadd.f32 %v124, %v130
    %v133 = vadd.f32 %v125, %v131
    %134 = vset.pattern.permute.xlu0 3
    %135 = vperm.xlu0 %134, %v52
    %v136 = vpop.permute.xlu0 %135
    %v138 = vmul.f32 %v82, %v136
    %v139 = vmul.f32 %v83, %v136
    %140 = vset.pattern.permute.xlu0 4
    %141 = vperm.xlu0 %140, %v52
    %v142 = vpop.permute.xlu0 %141
    %v144 = vmul.f32 %v50, %v142
    %v145 = vmul.f32 %v51, %v142
    %v146 = vadd.f32 %v138, %v144
    %v147 = vadd.f32 %v139, %v145
    %148 = vset.pattern.permute.xlu0 5
    %149 = vperm.xlu0 %148, %v52
    %v150 = vpop.permute.xlu0 %149
    %v152 = vmul.f32 %v109, %v150
    %v153 = vmul.f32 %v110, %v150
    %v154 = vadd.f32 %v146, %v152
    %v155 = vadd.f32 %v147, %v153
    %156 = vset.pattern.permute.xlu0 6
    %157 = vperm.xlu0 %156, %v52
    %v158 = vpop.permute.xlu0 %157
    %v160 = vmul.f32 %v82, %v158
    %v161 = vmul.f32 %v83, %v158
    %162 = vset.pattern.permute.xlu0 7
    %163 = vperm.xlu0 %162, %v52
    %v164 = vpop.permute.xlu0 %163
    %v166 = vmul.f32 %v50, %v164
    %v167 = vmul.f32 %v51, %v164
    %v168 = vadd.f32 %v160, %v166
    %v169 = vadd.f32 %v161, %v167
    %170 = vset.pattern.permute.xlu0 8
    %171 = vperm.xlu0 %170, %v52
    %v172 = vpop.permute.xlu0 %171
    %v174 = vmul.f32 %v109, %v172
    %v175 = vmul.f32 %v110, %v172
    %v176 = vadd.f32 %v168, %v174
    %v177 = vadd.f32 %v169, %v175
    %178 = vrot.lane.b32.xlu0 %v132, 16
    %v179 = vpop.permute.xlu0 %178
    %180 = vrot.lane.b32.xlu0 %v133, 16
    %v181 = vpop.permute.xlu0 %180
    %vm182 = vcmp.lt.s32.totalorder %v59, 16
    %v183 = vsel %vm182, %v179, %v181
    %v184 = vsel %vm182, %v181, %v179
    %v185 = vlaneseq
    %v186 = vshrl.u32 %v185, 7
    %v187 = vsub.s32 2, %v186
    %v188 = vrot.slane %v53, %v187
    %v189 = vlaneseq
    %v190 = vshrl.u32 %v189, 7
    %v191 = vsub.s32 6, %v190
    %v192 = vrot.slane %v53, %v191
    %v195 = vlaneseq
    %v196 = vshrl.u32 %v195, 7
    %v197 = vsub.s32 2, %v196
    %v198 = vrot.slane %v188, %v197
    %v199 = vlaneseq
    %v200 = vshrl.u32 %v199, 7
    %v201 = vsub.s32 2, %v200
    %v202 = vrot.slane %v192, %v201
    %v203 = vmul.f32 %v184, %v198
    %v204 = vmul.f32 %v183, %v202
    %v205 = vadd.f32 %v154, %v203
    %v206 = vadd.f32 %v155, %v204
    %207 = vrot.lane.b32.xlu0 %v176, 112
    %v208 = vpop.permute.xlu0 %207
    %209 = vrot.lane.b32.xlu0 %v177, 112
    %v210 = vpop.permute.xlu0 %209
    %vm211 = vcmp.lt.s32.totalorder %v59, 112
    %v212 = vsel %vm211, %v208, %v210
    %v213 = vsel %vm211, %v210, %v208
    %v214 = vlaneseq
    %v215 = vshrl.u32 %v214, 7
    %v216 = vsub.s32 3, %v215
    %v217 = vrot.slane %v53, %v216
    %v218 = vlaneseq
    %v219 = vshrl.u32 %v218, 7
    %v220 = vsub.s32 7, %v219
    %v221 = vrot.slane %v53, %v220
    %v224 = vlaneseq
    %v225 = vshrl.u32 %v224, 7
    %v226 = vsub.s32 3, %v225
    %v227 = vrot.slane %v217, %v226
    %v228 = vlaneseq
    %v229 = vshrl.u32 %v228, 7
    %v230 = vsub.s32 3, %v229
    %v231 = vrot.slane %v221, %v230
    %v232 = vmul.f32 %v212, %v227
    %v233 = vmul.f32 %v213, %v231
    %v234 = vadd.f32 %v205, %v232
    %v235 = vadd.f32 %v206, %v233
    %v236 = vadd.f32 %v234, %v235
    %237 = vadd.xlane.f32.xlu0 %v236
    %v238 = vpop.xlane.xlu0 %237
    %v239 = vmul.f32 %v234, %v234
    %v240 = vmul.f32 %v235, %v235
    %v241 = vadd.f32 %v239, %v240
    %242 = vadd.xlane.f32.xlu0 %v241
    %v243 = vpop.xlane.xlu0 %242
    %vm244 = vcmask 7168
    %v245 = vsel %vm244, %v238, %v243
    %vm246 = vcmask 15360
    %247 = vst.msk [vmem:[%s3] sm:$0xff] %vm246, %v245
    // Predicated region
    $region26: #{tpu_custom_call.1} parent=1 // pred_check
      _
    $region27: #{tpu_custom_call.1} parent=1 // pred_check_branch
      %249 = sbr.rel (0) target = $region29
    $region28: #{tpu_custom_call.1} parent=1 // pred_region
      _
    $region29: #{tpu_custom_call.1} parent=1 // pred_fallthru
      _
    // Predicated region
    $region30: #{tpu_custom_call.1} parent=1 // pred_check
      _
    $region31: #{tpu_custom_call.1} parent=1 // pred_check_branch
      %251 = sbr.rel (0) target = $region33
    $region32: #{tpu_custom_call.1} parent=1 // pred_region
      _
    $region33: #{tpu_custom_call.1} parent=1 // pred_fallthru
      _
    %252 = vsyncpa [#allocation3], 1
    %253 = vsyncpa [#allocation5], 1

</llo_original>
